<compile_context>
chip_gen: v7x
topology: tpu7x:2x2x1
jax: 0.10.0
libtpu: 0.0.40
codegen_flags: <defaults>
</compile_context>

<pallas_src>
import functools

import jax
import jax.numpy as jnp
from jax.experimental import pallas as pl
from jax.experimental.pallas import tpu as pltpu


def _moving_avg_kernel(x_ref, o_ref, xp_ref, *, seq_len, channels, kernel_size):
    """x_ref: (TB, F) input block; o_ref: (TB, F); xp_ref: (TB, Fpad) f32 scratch."""
    K, C, L = kernel_size, channels, seq_len
    F = L * C
    pad = (K - 1) // 2
    Fp = F + (K - 1) * C           # replicate-padded fused width
    Fpad = xp_ref.shape[1]         # Fp rounded up to a lane (128) multiple
    TB = x_ref.shape[0]

    # Single block load + single cast; all accumulation in f32.
    x = x_ref[...].astype(jnp.float32)                         # (TB, F)

    # Assemble the replicate-padded sequence in the VMEM scratch (one-time
    # O(K*C)-lane cost per block):
    #   xp = [x_t0]*pad ++ x ++ [x_t{L-1}]*pad   along the fused time*chan axis
    xp_ref[:, pl.ds(pad * C, F)] = x
    if pad > 0:
        first = x[:, :C]                                        # (TB, C)
        last = x[:, F - C:]                                     # (TB, C)
        for j in range(pad):
            xp_ref[:, pl.ds(j * C, C)] = first
            xp_ref[:, pl.ds(F + (pad + j) * C, C)] = last
    if Fpad > Fp:
        xp_ref[:, pl.ds(Fp, Fpad - Fp)] = jnp.zeros((TB, Fpad - Fp), jnp.float32)

    xpv = xp_ref[...]                                           # (TB, Fpad), one read

    def shift_left(v, s):
        # shift_left(v, s)[:, i] == v[:, (i + s) % Fpad].  pltpu.roll follows
        # jnp.roll semantics (result[i] = v[i - shift]), so roll by Fpad - s.
        # Circular wraparound only ever lands in lanes >= F, which the final
        # output never reads (all needed indices i + k*C < Fp <= Fpad).
        return v if s == 0 else pltpu.roll(v, Fpad - s, 1)

    # log2(K) doubling ladder: W_{2m}[:, i] = W_m[:, i] + W_m[:, i + m*C],
    # where W_m is the width-m sliding-window sum at stride C.  Only the W_{2^j}
    # needed by K's binary decomposition are retained.
    terms = []                                 # (width, W_width) for set bits of K
    w, width = xpv, 1
    if K & 1:
        terms.append((1, w))
    while 2 * width <= K:
        w = w + shift_left(w, width * C)
        width *= 2
        if K & width:
            terms.append((width, w))

    # Combine the set bits (largest first):  out[:, i] = sum_b W_b[:, i + off_b*C].
    acc, offset = None, 0
    for bw, bv in reversed(terms):
        t = shift_left(bv, offset * C)
        acc = t if acc is None else acc + t
        offset += bw

    o_ref[...] = (acc[:, :F] * (1.0 / K)).astype(o_ref.dtype)


def _pick_batch_tile(batch, fpad_lanes):
    """Batch rows per grid step.

    Sized so each in-flight (TB, Fpad) f32 value is ~2 MiB: the input block is
    then ~1-2 MiB (>=85%-of-HBM-roofline regime), while the handful of live f32
    ladder intermediates plus the double-buffered in/out blocks stay well inside
    v7x's 64 MiB VMEM (v5e/v6e have 128 MiB).  Prefers >= 2 grid steps (so both
    v7x TensorCores get work) whenever blocks stay >= ~512 KiB.  Blocks are a
    multiple of 8 rows (f32 sublane tile) or cover the full batch.
    """
    per_row_bytes = fpad_lanes * 4
    tb = max(1, (2 * 1024 * 1024) // per_row_bytes)
    if tb >= batch:
        half = (batch + 1) // 2
        if half * per_row_bytes >= 512 * 1024:
            tb = half
        else:
            return batch
    if tb >= batch:
        return batch
    tb = max(8, (tb // 8) * 8)
    return batch if tb >= batch else tb


def moving_average(x: jax.Array, kernel_size: int, *, block_batch=None) -> jax.Array:
    """DLinear MovingAverage forward: x (B, L, C) -> (B, L, C)."""
    assert kernel_size % 2 == 1, "kernel_size has to be odd number"
    B, L, C = x.shape
    K = kernel_size
    F = L * C
    Fp = F + (K - 1) * C
    Fpad = ((Fp + 127) // 128) * 128            # lane-aligned scratch width

    # Free, contiguous view for a row-major input: the fused time*channel axis
    # becomes the dense 128-wide lane axis (lane-dense loads AND stores).
    xf = x.reshape(B, F)

    # TODO(synk): for very large L*C (fused rows >> 1 MiB) split the fused axis
    # across a second grid dimension with a (K-1)*C halo instead of batch-only
    # tiling.
    TB = block_batch if block_batch is not None else _pick_batch_tile(B, Fpad)
    grid = (pl.cdiv(B, TB),)

    kernel = functools.partial(_moving_avg_kernel, seq_len=L, channels=C,
                               kernel_size=K)

    nbytes = x.dtype.itemsize
    cost = pl.CostEstimate(
        flops=2 * B * F * max(1, (K - 1).bit_length()),
        transcendentals=0,
        bytes_accessed=2 * B * F * nbytes,
    )

    out_f = pl.pallas_call(
        kernel,
        out_shape=jax.ShapeDtypeStruct((B, F), x.dtype),
        grid_spec=pltpu.PrefetchScalarGridSpec(
            num_scalar_prefetch=0,
            grid=grid,
            in_specs=[pl.BlockSpec((TB, F), lambda b: (b, 0))],
            out_specs=pl.BlockSpec((TB, F), lambda b: (b, 0)),
            scratch_shapes=[pltpu.VMEM((TB, Fpad), jnp.float32)],
        ),
        compiler_params=pltpu.CompilerParams(
            dimension_semantics=("parallel",),
            vmem_limit_bytes=48 * 1024 * 1024,   # <= v7x's 64 MiB, roomy on v5e/v6e
        ),
        cost_estimate=cost,
    )(xf)
    return out_f.reshape(B, L, C)


def _reference(x: jnp.ndarray, kernel_size: int) -> jnp.ndarray:
    """Pure-JAX reference matching the PyTorch forward."""
    pad = (kernel_size - 1) // 2
    front = jnp.repeat(x[:, 0:1, :], pad, axis=1)
    end = jnp.repeat(x[:, -1:, :], pad, axis=1)
    xp = jnp.concatenate([front, x, end], axis=1)
    L = x.shape[1]
    windows = jnp.stack([xp[:, k:k + L, :] for k in range(kernel_size)], axis=0)
    return jnp.mean(windows, axis=0)


if __name__ == "__main__":
    # Primary check: DLinear-like shape with the default kernel_size=25
    # (exercises the log2(K) ladder, heavy replicate padding, odd channel count).
    B, L, C = 4, 24, 7
    kernel_size = 25
    x = jax.random.normal(jax.random.PRNGKey(0), (B, L, C), dtype=jnp.float32)
    out = jax.block_until_ready(moving_average(x, kernel_size))
    ref = _reference(x, kernel_size)
    assert out.shape == (B, L, C)
    assert jnp.allclose(out, ref, atol=1e-5, rtol=1e-5), "mismatch vs reference"

    # Secondary check: ragged cdiv batch tiling (last block partially
    # out-of-bounds) and a small kernel size.
    B2, L2, C2, K2 = 12, 16, 8, 5
    x2 = jax.random.normal(jax.random.PRNGKey(1), (B2, L2, C2), dtype=jnp.float32)
    out2 = jax.block_until_ready(moving_average(x2, K2, block_batch=8))
    ref2 = _reference(x2, K2)
    assert jnp.allclose(out2, ref2, atol=1e-5, rtol=1e-5), "mismatch vs reference (ragged)"

    print("KERNEL_OK")
</pallas_src>

<mosaic_0001>
module attributes {stable_mosaic.version = 11 : i64} {
  func.func @_moving_avg_kernel(%arg0: i32, %arg1: memref<4x168xf32, #tpu.memory_space<vmem>>, %arg2: memref<4x168xf32, #tpu.memory_space<vmem>>, %arg3: memref<4x384xf32, #tpu.memory_space<vmem>>) attributes {dimension_semantics = [#tpu.dimension_semantics<parallel>], iteration_bounds = array<i64: 1>, scalar_prefetch = 0 : i64, scratch_operands = 1 : i64, tpu.core_type = #tpu.core_type<tc>, window_params = [{transform_indices = @transform_0, window_bounds = array<i64: 4, 168>}, {transform_indices = @transform_1, window_bounds = array<i64: 4, 168>}]} {
    %c0 = arith.constant 0 : index
    %c0_0 = arith.constant 0 : index
    %0 = vector.load %arg1[%c0, %c0_0] : memref<4x168xf32, #tpu.memory_space<vmem>>, vector<4x168xf32>
    %c0_1 = arith.constant 0 : index
    %c84 = arith.constant 84 : index
    %1 = vector.load %arg3[%c0_1, %c84] : memref<4x384xf32, #tpu.memory_space<vmem>>, vector<4x168xf32>
    tpu.vector_store %arg3[%c0_1, %c84], %0 {strides = array<i32>} : memref<4x384xf32, #tpu.memory_space<vmem>>, vector<4x168xf32>,
    %2 = vector.extract_strided_slice %0 {offsets = [0, 0], sizes = [4, 7], strides = [1, 1]} : vector<4x168xf32> to vector<4x7xf32>
    %3 = vector.extract_strided_slice %0 {offsets = [0, 161], sizes = [4, 7], strides = [1, 1]} : vector<4x168xf32> to vector<4x7xf32>
    %c0_2 = arith.constant 0 : index
    %c0_3 = arith.constant 0 : index
    %4 = vector.load %arg3[%c0_2, %c0_3] : memref<4x384xf32, #tpu.memory_space<vmem>>, vector<4x7xf32>
    tpu.vector_store %arg3[%c0_2, %c0_3], %2 {strides = array<i32>} : memref<4x384xf32, #tpu.memory_space<vmem>>, vector<4x7xf32>,
    %c0_4 = arith.constant 0 : index
    %c252 = arith.constant 252 : index
    %5 = vector.load %arg3[%c0_4, %c252] : memref<4x384xf32, #tpu.memory_space<vmem>>, vector<4x7xf32>
    tpu.vector_store %arg3[%c0_4, %c252], %3 {strides = array<i32>} : memref<4x384xf32, #tpu.memory_space<vmem>>, vector<4x7xf32>,
    %c0_5 = arith.constant 0 : index
    %c7 = arith.constant 7 : index
    %6 = vector.load %arg3[%c0_5, %c7] : memref<4x384xf32, #tpu.memory_space<vmem>>, vector<4x7xf32>
    tpu.vector_store %arg3[%c0_5, %c7], %2 {strides = array<i32>} : memref<4x384xf32, #tpu.memory_space<vmem>>, vector<4x7xf32>,
    %c0_6 = arith.constant 0 : index
    %c259 = arith.constant 259 : index
    %7 = vector.load %arg3[%c0_6, %c259] : memref<4x384xf32, #tpu.memory_space<vmem>>, vector<4x7xf32>
    tpu.vector_store %arg3[%c0_6, %c259], %3 {strides = array<i32>} : memref<4x384xf32, #tpu.memory_space<vmem>>, vector<4x7xf32>,
    %c0_7 = arith.constant 0 : index
    %c14 = arith.constant 14 : index
    %8 = vector.load %arg3[%c0_7, %c14] : memref<4x384xf32, #tpu.memory_space<vmem>>, vector<4x7xf32>
    tpu.vector_store %arg3[%c0_7, %c14], %2 {strides = array<i32>} : memref<4x384xf32, #tpu.memory_space<vmem>>, vector<4x7xf32>,
    %c0_8 = arith.constant 0 : index
    %c266 = arith.constant 266 : index
    %9 = vector.load %arg3[%c0_8, %c266] : memref<4x384xf32, #tpu.memory_space<vmem>>, vector<4x7xf32>
    tpu.vector_store %arg3[%c0_8, %c266], %3 {strides = array<i32>} : memref<4x384xf32, #tpu.memory_space<vmem>>, vector<4x7xf32>,
    %c0_9 = arith.constant 0 : index
    %c21 = arith.constant 21 : index
    %10 = vector.load %arg3[%c0_9, %c21] : memref<4x384xf32, #tpu.memory_space<vmem>>, vector<4x7xf32>
    tpu.vector_store %arg3[%c0_9, %c21], %2 {strides = array<i32>} : memref<4x384xf32, #tpu.memory_space<vmem>>, vector<4x7xf32>,
    %c0_10 = arith.constant 0 : index
    %c273 = arith.constant 273 : index
    %11 = vector.load %arg3[%c0_10, %c273] : memref<4x384xf32, #tpu.memory_space<vmem>>, vector<4x7xf32>
    tpu.vector_store %arg3[%c0_10, %c273], %3 {strides = array<i32>} : memref<4x384xf32, #tpu.memory_space<vmem>>, vector<4x7xf32>,
    %c0_11 = arith.constant 0 : index
    %c28 = arith.constant 28 : index
    %12 = vector.load %arg3[%c0_11, %c28] : memref<4x384xf32, #tpu.memory_space<vmem>>, vector<4x7xf32>
    tpu.vector_store %arg3[%c0_11, %c28], %2 {strides = array<i32>} : memref<4x384xf32, #tpu.memory_space<vmem>>, vector<4x7xf32>,
    %c0_12 = arith.constant 0 : index
    %c280 = arith.constant 280 : index
    %13 = vector.load %arg3[%c0_12, %c280] : memref<4x384xf32, #tpu.memory_space<vmem>>, vector<4x7xf32>
    tpu.vector_store %arg3[%c0_12, %c280], %3 {strides = array<i32>} : memref<4x384xf32, #tpu.memory_space<vmem>>, vector<4x7xf32>,
    %c0_13 = arith.constant 0 : index
    %c35 = arith.constant 35 : index
    %14 = vector.load %arg3[%c0_13, %c35] : memref<4x384xf32, #tpu.memory_space<vmem>>, vector<4x7xf32>
    tpu.vector_store %arg3[%c0_13, %c35], %2 {strides = array<i32>} : memref<4x384xf32, #tpu.memory_space<vmem>>, vector<4x7xf32>,
    %c0_14 = arith.constant 0 : index
    %c287 = arith.constant 287 : index
    %15 = vector.load %arg3[%c0_14, %c287] : memref<4x384xf32, #tpu.memory_space<vmem>>, vector<4x7xf32>
    tpu.vector_store %arg3[%c0_14, %c287], %3 {strides = array<i32>} : memref<4x384xf32, #tpu.memory_space<vmem>>, vector<4x7xf32>,
    %c0_15 = arith.constant 0 : index
    %c42 = arith.constant 42 : index
    %16 = vector.load %arg3[%c0_15, %c42] : memref<4x384xf32, #tpu.memory_space<vmem>>, vector<4x7xf32>
    tpu.vector_store %arg3[%c0_15, %c42], %2 {strides = array<i32>} : memref<4x384xf32, #tpu.memory_space<vmem>>, vector<4x7xf32>,
    %c0_16 = arith.constant 0 : index
    %c294 = arith.constant 294 : index
    %17 = vector.load %arg3[%c0_16, %c294] : memref<4x384xf32, #tpu.memory_space<vmem>>, vector<4x7xf32>
    tpu.vector_store %arg3[%c0_16, %c294], %3 {strides = array<i32>} : memref<4x384xf32, #tpu.memory_space<vmem>>, vector<4x7xf32>,
    %c0_17 = arith.constant 0 : index
    %c49 = arith.constant 49 : index
    %18 = vector.load %arg3[%c0_17, %c49] : memref<4x384xf32, #tpu.memory_space<vmem>>, vector<4x7xf32>
    tpu.vector_store %arg3[%c0_17, %c49], %2 {strides = array<i32>} : memref<4x384xf32, #tpu.memory_space<vmem>>, vector<4x7xf32>,
    %c0_18 = arith.constant 0 : index
    %c301 = arith.constant 301 : index
    %19 = vector.load %arg3[%c0_18, %c301] : memref<4x384xf32, #tpu.memory_space<vmem>>, vector<4x7xf32>
    tpu.vector_store %arg3[%c0_18, %c301], %3 {strides = array<i32>} : memref<4x384xf32, #tpu.memory_space<vmem>>, vector<4x7xf32>,
    %c0_19 = arith.constant 0 : index
    %c56 = arith.constant 56 : index
    %20 = vector.load %arg3[%c0_19, %c56] : memref<4x384xf32, #tpu.memory_space<vmem>>, vector<4x7xf32>
    tpu.vector_store %arg3[%c0_19, %c56], %2 {strides = array<i32>} : memref<4x384xf32, #tpu.memory_space<vmem>>, vector<4x7xf32>,
    %c0_20 = arith.constant 0 : index
    %c308 = arith.constant 308 : index
    %21 = vector.load %arg3[%c0_20, %c308] : memref<4x384xf32, #tpu.memory_space<vmem>>, vector<4x7xf32>
    tpu.vector_store %arg3[%c0_20, %c308], %3 {strides = array<i32>} : memref<4x384xf32, #tpu.memory_space<vmem>>, vector<4x7xf32>,
    %c0_21 = arith.constant 0 : index
    %c63 = arith.constant 63 : index
    %22 = vector.load %arg3[%c0_21, %c63] : memref<4x384xf32, #tpu.memory_space<vmem>>, vector<4x7xf32>
    tpu.vector_store %arg3[%c0_21, %c63], %2 {strides = array<i32>} : memref<4x384xf32, #tpu.memory_space<vmem>>, vector<4x7xf32>,
    %c0_22 = arith.constant 0 : index
    %c315 = arith.constant 315 : index
    %23 = vector.load %arg3[%c0_22, %c315] : memref<4x384xf32, #tpu.memory_space<vmem>>, vector<4x7xf32>
    tpu.vector_store %arg3[%c0_22, %c315], %3 {strides = array<i32>} : memref<4x384xf32, #tpu.memory_space<vmem>>, vector<4x7xf32>,
    %c0_23 = arith.constant 0 : index
    %c70 = arith.constant 70 : index
    %24 = vector.load %arg3[%c0_23, %c70] : memref<4x384xf32, #tpu.memory_space<vmem>>, vector<4x7xf32>
    tpu.vector_store %arg3[%c0_23, %c70], %2 {strides = array<i32>} : memref<4x384xf32, #tpu.memory_space<vmem>>, vector<4x7xf32>,
    %c0_24 = arith.constant 0 : index
    %c322 = arith.constant 322 : index
    %25 = vector.load %arg3[%c0_24, %c322] : memref<4x384xf32, #tpu.memory_space<vmem>>, vector<4x7xf32>
    tpu.vector_store %arg3[%c0_24, %c322], %3 {strides = array<i32>} : memref<4x384xf32, #tpu.memory_space<vmem>>, vector<4x7xf32>,
    %c0_25 = arith.constant 0 : index
    %c77 = arith.constant 77 : index
    %26 = vector.load %arg3[%c0_25, %c77] : memref<4x384xf32, #tpu.memory_space<vmem>>, vector<4x7xf32>
    tpu.vector_store %arg3[%c0_25, %c77], %2 {strides = array<i32>} : memref<4x384xf32, #tpu.memory_space<vmem>>, vector<4x7xf32>,
    %c0_26 = arith.constant 0 : index
    %c329 = arith.constant 329 : index
    %27 = vector.load %arg3[%c0_26, %c329] : memref<4x384xf32, #tpu.memory_space<vmem>>, vector<4x7xf32>
    tpu.vector_store %arg3[%c0_26, %c329], %3 {strides = array<i32>} : memref<4x384xf32, #tpu.memory_space<vmem>>, vector<4x7xf32>,
    %cst = arith.constant 0.000000e+00 : f32
    %28 = vector.broadcast %cst : f32 to vector<4x48xf32>
    %c0_27 = arith.constant 0 : index
    %c336 = arith.constant 336 : index
    %29 = vector.load %arg3[%c0_27, %c336] : memref<4x384xf32, #tpu.memory_space<vmem>>, vector<4x48xf32>
    tpu.vector_store %arg3[%c0_27, %c336], %28 {strides = array<i32>} : memref<4x384xf32, #tpu.memory_space<vmem>>, vector<4x48xf32>,
    %c0_28 = arith.constant 0 : index
    %c0_29 = arith.constant 0 : index
    %30 = vector.load %arg3[%c0_28, %c0_29] : memref<4x384xf32, #tpu.memory_space<vmem>>, vector<4x384xf32>
    %c377_i32 = arith.constant 377 : i32
    %31 = tpu.dynamic_rotate %30 by %c377_i32 dim 1 : vector<4x384xf32>, i32 -> vector<4x384xf32>
    %32 = arith.addf %30, %31 : vector<4x384xf32>
    %c370_i32 = arith.constant 370 : i32
    %33 = tpu.dynamic_rotate %32 by %c370_i32 dim 1 : vector<4x384xf32>, i32 -> vector<4x384xf32>
    %34 = arith.addf %32, %33 : vector<4x384xf32>
    %c356_i32 = arith.constant 356 : i32
    %35 = tpu.dynamic_rotate %34 by %c356_i32 dim 1 : vector<4x384xf32>, i32 -> vector<4x384xf32>
    %36 = arith.addf %34, %35 : vector<4x384xf32>
    %c328_i32 = arith.constant 328 : i32
    %37 = tpu.dynamic_rotate %36 by %c328_i32 dim 1 : vector<4x384xf32>, i32 -> vector<4x384xf32>
    %38 = arith.addf %36, %37 : vector<4x384xf32>
    %c272_i32 = arith.constant 272 : i32
    %39 = tpu.dynamic_rotate %36 by %c272_i32 dim 1 : vector<4x384xf32>, i32 -> vector<4x384xf32>
    %40 = arith.addf %38, %39 : vector<4x384xf32>
    %c216_i32 = arith.constant 216 : i32
    %41 = tpu.dynamic_rotate %30 by %c216_i32 dim 1 : vector<4x384xf32>, i32 -> vector<4x384xf32>
    %42 = arith.addf %40, %41 : vector<4x384xf32>
    %43 = vector.extract_strided_slice %42 {offsets = [0, 0], sizes = [4, 168], strides = [1, 1]} : vector<4x384xf32> to vector<4x168xf32>
    %cst_30 = arith.constant 4.000000e-02 : f32
    %44 = vector.broadcast %cst_30 : f32 to vector<4x168xf32>
    %45 = arith.mulf %43, %44 : vector<4x168xf32>
    %c0_31 = arith.constant 0 : index
    %c0_32 = arith.constant 0 : index
    %46 = vector.load %arg2[%c0_31, %c0_32] : memref<4x168xf32, #tpu.memory_space<vmem>>, vector<4x168xf32>
    tpu.vector_store %arg2[%c0_31, %c0_32], %45 {strides = array<i32>} : memref<4x168xf32, #tpu.memory_space<vmem>>, vector<4x168xf32>,
    return
  }
  func.func @transform_0(%arg0: i32) -> (i32, i32) {
    %c0_i32 = arith.constant 0 : i32
    %c0_i32_0 = arith.constant 0 : i32
    return %arg0, %c0_i32 : i32, i32
  }
  func.func @transform_1(%arg0: i32) -> (i32, i32) {
    %c0_i32 = arith.constant 0 : i32
    %c0_i32_0 = arith.constant 0 : i32
    return %arg0, %c0_i32 : i32, i32
  }
}

</mosaic_0001>

<llo_original>
// kernel: tpu_custom_call.1
$region0: #{tpu_custom_call.1}
  #allocation0 [shape = 'u32[]', space=smem, size = 0x4, offset = 0x4, fixed_abs, tag = 'smem constant byte address 0x4 - core index']
  #allocation1 [shape = 'u32[144,128]{1,0:T(1,128)}', space=vmem, size = 0x12000, scoped, tag = 'internal scratch']
  #allocation2 [shape = 'f32[4,384]{1,0:T(4,128)}', space=vmem, size = 0x1800, scoped, tag = 'scratch operand']
  %s0 = inlined_call_operand.hbm [shape: f32[4,168], index: 0, kind: input, shape index: {}]
  %s1 = inlined_call_operand.hbm [shape: f32[4,168], index: 1, kind: output, shape index: {}]
  %s2 = sld [smem:[#allocation0]]
  $region18: #{tpu_custom_call.1} parent=0
    _
  %s4 = ssub.s32 1, %s2
  %s5 = scalar_select 0, %s4, %s2
  $region1: #{tpu_custom_call.1} parent=0
    #allocation3 [shape = 'u8[4096]{0}', space=vmem, size = 0x1000, scoped, tag = 'input window, operand 0, single buffered']
    #allocation4 [shape = 's32[1]{0}', space=sflag, size = 0x4, scoped, tag = 'scoped memory for tpu_custom_call.1']
    #allocation5 [shape = 's32[1]{0}', space=sflag, size = 0x4, scoped, tag = 'scoped memory for tpu_custom_call.1']
    #allocation6 [shape = 'u8[4096]{0}', space=vmem, size = 0x1000, scoped, tag = 'output window, operand 0, single buffered']
    %6 = vsyncpa [#allocation4], 0
    %7 = vsyncpa [#allocation5], 0
    // Predicated region
    $region2: #{tpu_custom_call.1} parent=1 // pred_check
      _
    $region3: #{tpu_custom_call.1} parent=1 // pred_check_branch
      %9 = sbr.rel (0) target = $region5
    $region4: #{tpu_custom_call.1} parent=1 // pred_region
      %s11 = ssub.s32 128, 128
      %12 = vsyncadd [#allocation4], %s11
      %s14 = sshll.u32 [#allocation3], 4
      %s15 = int_to_ptr.vmem [resolvable:$true] %s14
      %17 = dma.hbm_to_vmem [thread:$0]  %s0, 128, %s15, [#allocation4]
    $region5: #{tpu_custom_call.1} parent=1 // pred_fallthru
      _
    // Predicated region
    $region6: #{tpu_custom_call.1} parent=1 // pred_check
      _
    $region7: #{tpu_custom_call.1} parent=1 // pred_check_branch
      %19 = sbr.rel (0) target = $region9
    $region8: #{tpu_custom_call.1} parent=1 // pred_region
      %20 = dma.done [#allocation4], 128
    $region9: #{tpu_custom_call.1} parent=1 // pred_fallthru
      _
    %v21 = vld [vmem:[#allocation3] sm:$0xff]
    %23 = vrot.lane.b32.xlu0 %v21, 84
    %v24 = vpop.permute.xlu0 %23
    %v25 = vrot.slane %v24, 4
    %vm26 = vcmask 687104
    %v27 = vsel %vm26, %v25, %v24
    %vm29 = vcmask 1044128
    %vm30 = vcmask 1014788
    %vm31 = vmor %vm30, %vm29
    %32 = vst.msk [vmem:[#allocation2] sm:$0xff] %vm31, %v27
    %vm33 = vcmask 52224
    %34 = vst.msk [vmem:[#allocation2] sm:$0xf] %vm33, %v21
    %35 = vrot.lane.b32.xlu0 %v21, 91
    %v36 = vpop.permute.xlu0 %35
    %v37 = vrot.slane %v36, 4
    %vm38 = vcmask 744448
    %v39 = vsel %vm38, %v36, %v37
    %vm41 = vcmask 1044448
    %vm42 = vcmask 23556
    %vm43 = vmor %vm42, %vm41
    %44 = vst.msk [vmem:[#allocation2 + $0x4] sm:$0xff] %vm43, %v39
    %45 = vrot.lane.b32.xlu0 %v21, 7
    %v46 = vpop.permute.xlu0 %45
    %vm48 = vcmask 109624
    %49 = vst.msk [vmem:[#allocation2] sm:$0xf] %vm48, %v46
    %50 = vrot.lane.b32.xlu0 %v21, 98
    %v51 = vpop.permute.xlu0 %50
    %v52 = vrot.slane %v51, 4
    %vm54 = vcmask 76824
    %55 = vst.msk [vmem:[#allocation2 + $0x8] sm:$0xf] %vm54, %v52
    %56 = vrot.lane.b32.xlu0 %v21, 14
    %v57 = vpop.permute.xlu0 %56
    %vm59 = vcmask 167024
    %60 = vst.msk [vmem:[#allocation2] sm:$0xf] %vm59, %v57
    %61 = vrot.lane.b32.xlu0 %v21, 105
    %v62 = vpop.permute.xlu0 %61
    %v63 = vrot.slane %v62, 4
    %vm65 = vcmask 134224
    %66 = vst.msk [vmem:[#allocation2 + $0x8] sm:$0xf] %vm65, %v63
    %67 = vrot.lane.b32.xlu0 %v21, 21
    %v68 = vpop.permute.xlu0 %67
    %vm70 = vcmask 224424
    %71 = vst.msk [vmem:[#allocation2] sm:$0xf] %vm70, %v68
    %72 = vrot.lane.b32.xlu0 %v21, 112
    %v73 = vpop.permute.xlu0 %72
    %v74 = vrot.slane %v73, 4
    %vm76 = vcmask 191624
    %77 = vst.msk [vmem:[#allocation2 + $0x8] sm:$0xf] %vm76, %v74
    %78 = vrot.lane.b32.xlu0 %v21, 28
    %v79 = vpop.permute.xlu0 %78
    %vm81 = vcmask 281824
    %82 = vst.msk [vmem:[#allocation2] sm:$0xf] %vm81, %v79
    %83 = vrot.lane.b32.xlu0 %v21, 119
    %v84 = vpop.permute.xlu0 %83
    %v85 = vrot.slane %v84, 4
    %vm87 = vcmask 249024
    %88 = vst.msk [vmem:[#allocation2 + $0x8] sm:$0xf] %vm87, %v85
    %89 = vrot.lane.b32.xlu0 %v21, 35
    %v90 = vpop.permute.xlu0 %89
    %vm92 = vcmask 339224
    %93 = vst.msk [vmem:[#allocation2] sm:$0xf] %vm92, %v90
    %94 = vrot.lane.b32.xlu0 %v21, 126
    %v95 = vpop.permute.xlu0 %94
    %v96 = vrot.slane %v95, 4
    %vm98 = vcmask 306424
    %99 = vst.msk [vmem:[#allocation2 + $0x8] sm:$0xf] %vm98, %v96
    %100 = vrot.lane.b32.xlu0 %v21, 42
    %v101 = vpop.permute.xlu0 %100
    %vm103 = vcmask 396624
    %104 = vst.msk [vmem:[#allocation2] sm:$0xf] %vm103, %v101
    %105 = vrot.lane.b32.xlu0 %v21, 5
    %v106 = vpop.permute.xlu0 %105
    %v107 = vrot.slane %v106, 4
    %vm108 = vcmask 39936
    %v109 = vsel %vm108, %v106, %v107
    %vm111 = vcmask 363824
    %112 = vst.msk [vmem:[#allocation2 + $0x8] sm:$0xf] %vm111, %v109
    %113 = vrot.lane.b32.xlu0 %v21, 49
    %v114 = vpop.permute.xlu0 %113
    %vm116 = vcmask 454024
    %117 = vst.msk [vmem:[#allocation2] sm:$0xf] %vm116, %v114
    %118 = vrot.lane.b32.xlu0 %v21, 12
    %v119 = vpop.permute.xlu0 %118
    %v120 = vrot.slane %v119, 4
    %vm121 = vcmask 97280
    %v122 = vsel %vm121, %v119, %v120
    %vm124 = vcmask 421224
    %125 = vst.msk [vmem:[#allocation2 + $0x8] sm:$0xf] %vm124, %v122
    %126 = vrot.lane.b32.xlu0 %v21, 56
    %v127 = vpop.permute.xlu0 %126
    %vm129 = vcmask 511424
    %130 = vst.msk [vmem:[#allocation2] sm:$0xf] %vm129, %v127
    %131 = vrot.lane.b32.xlu0 %v21, 19
    %v132 = vpop.permute.xlu0 %131
    %v133 = vrot.slane %v132, 4
    %vm134 = vcmask 154624
    %v135 = vsel %vm134, %v132, %v133
    %vm137 = vcmask 478624
    %138 = vst.msk [vmem:[#allocation2 + $0x8] sm:$0xf] %vm137, %v135
    %139 = vrot.lane.b32.xlu0 %v21, 63
    %v140 = vpop.permute.xlu0 %139
    %vm142 = vcmask 568824
    %143 = vst.msk [vmem:[#allocation2] sm:$0xf] %vm142, %v140
    %144 = vrot.lane.b32.xlu0 %v21, 26
    %v145 = vpop.permute.xlu0 %144
    %v146 = vrot.slane %v145, 4
    %vm147 = vcmask 211968
    %v148 = vsel %vm147, %v145, %v146
    %vm150 = vcmask 536024
    %151 = vst.msk [vmem:[#allocation2 + $0x8] sm:$0xf] %vm150, %v148
    %152 = vrot.lane.b32.xlu0 %v21, 70
    %v153 = vpop.permute.xlu0 %152
    %vm155 = vcmask 626224
    %156 = vst.msk [vmem:[#allocation2] sm:$0xf] %vm155, %v153
    %157 = vrot.lane.b32.xlu0 %v21, 33
    %v158 = vpop.permute.xlu0 %157
    %v159 = vrot.slane %v158, 4
    %vm160 = vcmask 269312
    %v161 = vsel %vm160, %v158, %v159
    %vm163 = vcmask 593424
    %164 = vst.msk [vmem:[#allocation2 + $0x8] sm:$0xf] %vm163, %v161
    %165 = vrot.lane.b32.xlu0 %v21, 77
    %v166 = vpop.permute.xlu0 %165
    %vm168 = vcmask 683624
    %169 = vst.msk [vmem:[#allocation2] sm:$0xf] %vm168, %v166
    %170 = vrot.lane.b32.xlu0 %v21, 40
    %v171 = vpop.permute.xlu0 %170
    %v172 = vrot.slane %v171, 4
    %vm173 = vcmask 326656
    %v174 = vsel %vm173, %v171, %v172
    %vm176 = vcmask 650824
    %177 = vst.msk [vmem:[#allocation2 + $0x8] sm:$0xf] %vm176, %v174
    %vm178 = vcmask 1044096
    %179 = vst.msk [vmem:[#allocation2 + $0x8] sm:$0xf] %vm178, 0.0
    %v180 = vld [vmem:[#allocation2] sm:$0xff]
    %v181 = vld [vmem:[#allocation2 + $0x8] sm:$0xf]
    %v183 = vcombine.high %v180, %v180
    %185 = vrot.lane.b32.xlu0 %v180, 121
    %v186 = vpop.permute.xlu0 %185
    %187 = vrot.lane.b32.xlu0 %v183, 121
    %v188 = vpop.permute.xlu0 %187
    %189 = vrot.lane.b32.xlu0 %v181, 121
    %v190 = vpop.permute.xlu0 %189
    %v191 = vlaneseq
    %v192 = vand.u32 %v191, 127
    %vm193 = vcmp.lt.s32.totalorder %v192, 121
    %v194 = vsel %vm193, %v188, %v190
    %v195 = vsel %vm193, %v186, %v188
    %v196 = vsel %vm193, %v190, %v186
    %v199 = vcombine.low %v195, %v194
    %v201 = vadd.f32 %v180, %v199
    %v202 = vadd.f32 %v181, %v196
    %v204 = vcombine.high %v201, %v201
    %206 = vrot.lane.b32.xlu0 %v201, 114
    %v207 = vpop.permute.xlu0 %206
    %208 = vrot.lane.b32.xlu0 %v204, 114
    %v209 = vpop.permute.xlu0 %208
    %210 = vrot.lane.b32.xlu0 %v202, 114
    %v211 = vpop.permute.xlu0 %210
    %vm212 = vcmp.lt.s32.totalorder %v192, 114
    %v213 = vsel %vm212, %v209, %v211
    %v214 = vsel %vm212, %v207, %v209
    %v215 = vsel %vm212, %v211, %v207
    %v218 = vcombine.low %v214, %v213
    %v220 = vadd.f32 %v201, %v218
    %v221 = vadd.f32 %v202, %v215
    %v223 = vcombine.high %v220, %v220
    %225 = vrot.lane.b32.xlu0 %v220, 100
    %v226 = vpop.permute.xlu0 %225
    %227 = vrot.lane.b32.xlu0 %v223, 100
    %v228 = vpop.permute.xlu0 %227
    %229 = vrot.lane.b32.xlu0 %v221, 100
    %v230 = vpop.permute.xlu0 %229
    %vm231 = vcmp.lt.s32.totalorder %v192, 100
    %v232 = vsel %vm231, %v228, %v230
    %v233 = vsel %vm231, %v226, %v228
    %v234 = vsel %vm231, %v230, %v226
    %v237 = vcombine.low %v233, %v232
    %v239 = vadd.f32 %v220, %v237
    %v240 = vadd.f32 %v221, %v234
    %v242 = vcombine.high %v239, %v239
    %244 = vrot.lane.b32.xlu0 %v239, 72
    %v245 = vpop.permute.xlu0 %244
    %246 = vrot.lane.b32.xlu0 %v242, 72
    %v247 = vpop.permute.xlu0 %246
    %248 = vrot.lane.b32.xlu0 %v240, 72
    %v249 = vpop.permute.xlu0 %248
    %vm250 = vcmp.lt.s32.totalorder %v192, 72
    %v251 = vsel %vm250, %v247, %v249
    %v252 = vsel %vm250, %v245, %v247
    %v255 = vcombine.low %v252, %v251
    %v257 = vadd.f32 %v239, %v255
    %258 = vrot.lane.b32.xlu0 %v239, 16
    %v259 = vpop.permute.xlu0 %258
    %260 = vrot.lane.b32.xlu0 %v242, 16
    %v261 = vpop.permute.xlu0 %260
    %262 = vrot.lane.b32.xlu0 %v240, 16
    %v263 = vpop.permute.xlu0 %262
    %vm264 = vcmp.lt.s32.totalorder %v192, 16
    %v265 = vsel %vm264, %v261, %v263
    %v266 = vsel %vm264, %v259, %v261
    %v269 = vcombine.low %v266, %v265
    %v271 = vadd.f32 %v257, %v269
    %272 = vrot.lane.b32.xlu0 %v180, 88
    %v273 = vpop.permute.xlu0 %272
    %274 = vrot.lane.b32.xlu0 %v183, 88
    %v275 = vpop.permute.xlu0 %274
    %276 = vrot.lane.b32.xlu0 %v181, 88
    %v277 = vpop.permute.xlu0 %276
    %vm278 = vcmp.lt.s32.totalorder %v192, 88
    %v279 = vsel %vm278, %v275, %v277
    %v280 = vsel %vm278, %v277, %v273
    %v283 = vcombine.low %v279, %v280
    %v285 = vadd.f32 %v271, %v283
    %v286 = vmul.f32 %v285, 0.04
    %vm287 = vcmask 1043456
    %vm288 = vcmask 326660
    %vm289 = vmor %vm288, %vm287
    %290 = vst.msk [vmem:[#allocation6] sm:$0xff] %vm289, %v286
    // Predicated region
    $region10: #{tpu_custom_call.1} parent=1 // pred_check
      _
    $region11: #{tpu_custom_call.1} parent=1 // pred_check_branch
      %292 = sbr.rel (0) target = $region13
    $region12: #{tpu_custom_call.1} parent=1 // pred_region
      %s294 = ssub.s32 128, 128
      %295 = vsyncadd [#allocation5], %s294
      %s297 = sshll.u32 [#allocation6], 4
      %s298 = int_to_ptr.vmem [resolvable:$true] %s297
      %300 = dma.vmem_to_hbm [thread:$0]  %s298, 128, %s1, [#allocation5]
    $region13: #{tpu_custom_call.1} parent=1 // pred_fallthru
      _
    // Predicated region
    $region14: #{tpu_custom_call.1} parent=1 // pred_check
      _
    $region15: #{tpu_custom_call.1} parent=1 // pred_check_branch
      %302 = sbr.rel (0) target = $region17
    $region16: #{tpu_custom_call.1} parent=1 // pred_region
      %303 = dma.done [#allocation5], 128
    $region17: #{tpu_custom_call.1} parent=1 // pred_fallthru
      _
    %304 = vsyncpa [#allocation4], 1
    %305 = vsyncpa [#allocation5], 1

</llo_original>
